<compile_context>
chip_gen: v7x
topology: tpu7x:2x2x1
jax: 0.10.0
libtpu: 0.0.40
codegen_flags: <defaults>
</compile_context>

<pallas_src>
import jax
import jax.numpy as jnp
from jax.experimental import pallas as pl
from jax.experimental.pallas import tpu as pltpu


_LANE = 128
_BLOCK_BYTES_BUDGET = 2 * 1024 * 1024  # ~2 MiB/block -> 8 MiB double-buffered
_TN_CAP = 2048                          # lanes per block (wide, contiguous bursts)


def _round_up(v, m):
    return ((v + m - 1) // m) * m


def _sublane_pack(dtype):
    # f32 -> 8 sublanes/vreg, bf16 -> 16, int8/fp8 -> 32.
    return max(8, 32 // jnp.dtype(dtype).itemsize)


def _is_multi_tc():
    # v7x exposes 2 TensorCores per chip; gate the grid-splitting on it.
    try:
        kind = str(jax.devices()[0].device_kind).lower()
    except Exception:
        return False
    return "v7" in kind


def _pick_row_repeat(b, n, sublane_pack):
    """Fold feature groups into rows for small-batch / long-feature inputs.
    Returns R such that n % R == 0 and (n // R) % 128 == 0."""
    if n % _LANE != 0 or b >= sublane_pack:
        return 1
    m = n // _LANE
    if m <= 1:
        return 1
    divisors = sorted({d for i in range(1, int(m ** 0.5) + 1) if m % i == 0
                       for d in (i, m // i)})
    for d in divisors:
        if b * d >= sublane_pack:
            return d
    return divisors[-1]


def _drop_path_kernel(x_ref, scale_ref, o_ref):
    # Single broadcast multiply in the input dtype (DMA-bound).  The (tb, 1)
    # scale cast is negligible and keeps bf16 data packed in vregs.
    o_ref[...] = x_ref[...] * scale_ref[...].astype(x_ref.dtype)


def drop_path_pallas(x, drop_prob: float, training: bool, key):
    """Pallas implementation of drop_path(x, drop_prob, training)."""
    if drop_prob == 0.0 or not training:
        return x
    if drop_prob >= 1.0:
        # keep_prob == 0 -> every path dropped (avoids inf*0 = NaN).
        return jnp.zeros_like(x)
    if x.size == 0:
        return x

    keep_prob = 1.0 - float(drop_prob)
    orig_shape = x.shape
    b = orig_shape[0]
    n = 1
    for d in orig_shape[1:]:
        n *= d

    itemsize = jnp.dtype(x.dtype).itemsize
    sub = _sublane_pack(x.dtype)

    # Per-sample scale precomputed in f32:
    # floor(keep_prob + U[0,1)) * (1/keep_prob)  ->  {0, 1/keep_prob}.
    rand = jax.random.uniform(key, (b, 1), dtype=jnp.float32)
    scale = jnp.floor(keep_prob + rand) * (1.0 / keep_prob)  # (b, 1) f32

    # Small-batch / long-feature: fill vreg sublanes by folding feature groups
    # into rows (contiguous reshape -> free; last dim stays a 128 multiple).
    r = _pick_row_repeat(b, n, sub)
    b_eff, n_eff = b * r, n // r
    x2d = x.reshape(b_eff, n_eff)
    if r > 1:
        scale = jnp.repeat(scale, r, axis=0)  # (b_eff, 1), tiny

    # ---- tile selection: lane axis first, then rows from the VMEM budget ----
    tn = min(_round_up(n_eff, _LANE), _TN_CAP)
    tb = max(sub, (_BLOCK_BYTES_BUDGET // (tn * itemsize)) // sub * sub)
    tb = min(tb, _round_up(b_eff, sub))

    grid = (pl.cdiv(b_eff, tb), pl.cdiv(n_eff, tn))

    # v7x (2 TensorCores): a (1,1) grid leaves one core idle -> split the
    # batch axis if possible (keeps tn wide), else halve tn.  Single-TC parts
    # keep the single big block (an extra grid step there is a pure loss).
    if _is_multi_tc() and grid == (1, 1):
        if b_eff >= 2 * sub:
            tb = _round_up(pl.cdiv(b_eff, 2), sub)
        elif n_eff >= 2 * _LANE:
            tn = max(_LANE, _round_up(pl.cdiv(n_eff, 2), _LANE))
        grid = (pl.cdiv(b_eff, tb), pl.cdiv(n_eff, tn))

    out = pl.pallas_call(
        _drop_path_kernel,
        out_shape=jax.ShapeDtypeStruct((b_eff, n_eff), x2d.dtype),
        grid_spec=pltpu.PrefetchScalarGridSpec(
            num_scalar_prefetch=0,
            grid=grid,
            in_specs=[
                pl.BlockSpec((tb, tn), lambda i, j: (i, j)),  # x tile
                pl.BlockSpec((tb, 1), lambda i, j: (i, 0)),   # per-sample scale
            ],
            out_specs=pl.BlockSpec((tb, tn), lambda i, j: (i, j)),
        ),
        compiler_params=pltpu.CompilerParams(
            dimension_semantics=("parallel", "parallel"),
        ),
    )(x2d, scale)

    return out.reshape(orig_shape)


class DropPath:
    """JAX/Pallas mirror of the PyTorch DropPath module."""

    def __init__(self, drop_prob=None):
        self.drop_prob = drop_prob
        self.training = True

    def __call__(self, x, key):
        return drop_path_pallas(x, self.drop_prob or 0.0, self.training, key)


def _reference(x, drop_prob, key):
    keep_prob = 1.0 - drop_prob
    rand = jax.random.uniform(key, (x.shape[0], 1), dtype=jnp.float32)
    mask = jnp.floor(keep_prob + rand).reshape(
        (x.shape[0],) + (1,) * (x.ndim - 1))
    return x * (mask * (1.0 / keep_prob)).astype(x.dtype)


if __name__ == "__main__":
    key = jax.random.PRNGKey(0)
    k_x, k_d1, k_x2, k_d2, k_x3, k_d3, k_x4, k_d4 = jax.random.split(key, 8)

    drop_prob = 0.25
    module = DropPath(drop_prob=drop_prob)
    module.training = True

    # Small ViT-like token tensor: batch=2, seq=8, hidden=32 (N=256, 128-mult).
    x = jax.random.normal(k_x, (2, 8, 32), dtype=jnp.float32)
    out = jax.block_until_ready(module(x, k_d1))
    ref = _reference(x, drop_prob, k_d1)
    assert jnp.allclose(out, ref, rtol=1e-5, atol=1e-6), "mismatch vs reference"

    # Ragged feature size (exercises partial trailing blocks): (3, 5, 7) -> N=35.
    x2 = jax.random.normal(k_x2, (3, 5, 7), dtype=jnp.float32)
    out2 = jax.block_until_ready(module(x2, k_d2))
    ref2 = _reference(x2, drop_prob, k_d2)
    assert jnp.allclose(out2, ref2, rtol=1e-5, atol=1e-6), "ragged mismatch"

    # ViT-shaped tensor (small-batch reshape + partial batch/feature tiles).
    x3 = jax.random.normal(k_x3, (2, 197, 768), dtype=jnp.float32)
    out3 = jax.block_until_ready(module(x3, k_d3))
    ref3 = _reference(x3, drop_prob, k_d3)
    assert jnp.allclose(out3, ref3, rtol=1e-5, atol=1e-6), "vit-shape mismatch"

    # bf16 path (native-dtype multiply; scale rounded once per block).
    x4 = jax.random.normal(k_x4, (2, 8, 32), dtype=jnp.bfloat16)
    out4 = jax.block_until_ready(module(x4, k_d4))
    ref4 = _reference(x4, drop_prob, k_d4)
    assert jnp.allclose(out4.astype(jnp.float32), ref4.astype(jnp.float32),
                        rtol=1e-2, atol=1e-2), "bf16 mismatch"

    # Eval / drop_prob=0 path returns x unchanged.
    module.training = False
    out_eval = jax.block_until_ready(module(x, k_d1))
    assert jnp.array_equal(out_eval, x)

    # drop_prob >= 1.0 path: all paths dropped (no NaN).
    module_all = DropPath(drop_prob=1.0)
    out_all = jax.block_until_ready(module_all(x, k_d1))
    assert jnp.array_equal(out_all, jnp.zeros_like(x))

    print("KERNEL_OK")
</pallas_src>

<mosaic_0001>
module attributes {stable_mosaic.version = 11 : i64} {
  func.func @_drop_path_kernel(%arg0: i32, %arg1: i32, %arg2: memref<8x128xf32, #tpu.memory_space<vmem>>, %arg3: memref<8x1xf32, #tpu.memory_space<vmem>>, %arg4: memref<8x128xf32, #tpu.memory_space<vmem>>) attributes {dimension_semantics = [#tpu.dimension_semantics<parallel>, #tpu.dimension_semantics<parallel>], iteration_bounds = array<i64: 1, 1>, scalar_prefetch = 0 : i64, scratch_operands = 0 : i64, tpu.core_type = #tpu.core_type<tc>, window_params = [{transform_indices = @transform_0, window_bounds = array<i64: 8, 128>}, {transform_indices = @transform_1, window_bounds = array<i64: 8, 1>}, {transform_indices = @transform_2, window_bounds = array<i64: 8, 128>}]} {
    %c0 = arith.constant 0 : index
    %c0_0 = arith.constant 0 : index
    %0 = vector.load %arg2[%c0, %c0_0] : memref<8x128xf32, #tpu.memory_space<vmem>>, vector<8x128xf32>
    %c0_1 = arith.constant 0 : index
    %c0_2 = arith.constant 0 : index
    %1 = vector.load %arg3[%c0_1, %c0_2] : memref<8x1xf32, #tpu.memory_space<vmem>>, vector<8x1xf32>
    %2 = vector.broadcast %1 : vector<8x1xf32> to vector<8x128xf32>
    %3 = arith.mulf %0, %2 : vector<8x128xf32>
    %c0_3 = arith.constant 0 : index
    %c0_4 = arith.constant 0 : index
    %4 = vector.load %arg4[%c0_3, %c0_4] : memref<8x128xf32, #tpu.memory_space<vmem>>, vector<8x128xf32>
    tpu.vector_store %arg4[%c0_3, %c0_4], %3 {strides = array<i32>} : memref<8x128xf32, #tpu.memory_space<vmem>>, vector<8x128xf32>,
    return
  }
  func.func @transform_0(%arg0: i32, %arg1: i32) -> (i32, i32) {
    %c0_i32 = arith.constant 0 : i32
    return %arg0, %arg1 : i32, i32
  }
  func.func @transform_1(%arg0: i32, %arg1: i32) -> (i32, i32) {
    %c0_i32 = arith.constant 0 : i32
    %c0_i32_0 = arith.constant 0 : i32
    return %arg0, %c0_i32 : i32, i32
  }
  func.func @transform_2(%arg0: i32, %arg1: i32) -> (i32, i32) {
    %c0_i32 = arith.constant 0 : i32
    return %arg0, %arg1 : i32, i32
  }
}

</mosaic_0001>

<llo_original>
// kernel: tpu_custom_call.1
$region0: #{tpu_custom_call.1}
  #allocation0 [shape = 'u32[]', space=smem, size = 0x4, offset = 0x4, fixed_abs, tag = 'smem constant byte address 0x4 - core index']
  #allocation1 [shape = 'u32[144,128]{1,0:T(1,128)}', space=vmem, size = 0x12000, scoped, tag = 'internal scratch']
  %s0 = inlined_call_operand.vmem [shape: f32[4,128], index: 0, kind: input, shape index: {}]
  %s1 = inlined_call_operand.vmem [shape: f32[4,1], index: 1, kind: input, shape index: {}]
  %s2 = inlined_call_operand.hbm [shape: f32[4,128], index: 2, kind: output, shape index: {}]
  %s3 = sld [smem:[#allocation0]]
  $region18: #{tpu_custom_call.1} parent=0
    _
  %s5 = ssub.s32 1, %s3
  %s6 = scalar_select 0, %s5, %s3
  $region1: #{tpu_custom_call.1} parent=0
    #allocation2 [shape = 'u8[4096]{0}', space=vmem, size = 0x1000, scoped, tag = 'output window, operand 0, single buffered']
    #allocation3 [shape = 's32[1]{0}', space=sflag, size = 0x4, scoped, tag = 'scoped memory for tpu_custom_call.1']
    %7 = vsyncpa [#allocation3], 0
    // Predicated region
    $region2: #{tpu_custom_call.1} parent=1 // pred_check
      _
    $region3: #{tpu_custom_call.1} parent=1 // pred_check_branch
      %9 = sbr.rel (0) target = $region5
    $region4: #{tpu_custom_call.1} parent=1 // pred_region
      _
    $region5: #{tpu_custom_call.1} parent=1 // pred_fallthru
      _
    // Predicated region
    $region6: #{tpu_custom_call.1} parent=1 // pred_check
      _
    $region7: #{tpu_custom_call.1} parent=1 // pred_check_branch
      %11 = sbr.rel (0) target = $region9
    $region8: #{tpu_custom_call.1} parent=1 // pred_region
      _
    $region9: #{tpu_custom_call.1} parent=1 // pred_fallthru
      _
    %v12 = vld [vmem:[%s0] sm:$0xff]
    %v13 = vld [vmem:[%s1] sm:$0xff]
    %15 = vset.pattern.permute.xlu0 0
    %16 = vperm.xlu0 %15, %v13
    %v17 = vpop.permute.xlu0 %16
    %v19 = vmul.f32 %v12, %v17
    %20 = vst [vmem:[#allocation2] sm:$0xff] %v19
    // Predicated region
    $region10: #{tpu_custom_call.1} parent=1 // pred_check
      _
    $region11: #{tpu_custom_call.1} parent=1 // pred_check_branch
      %22 = sbr.rel (0) target = $region13
    $region12: #{tpu_custom_call.1} parent=1 // pred_region
      %s24 = ssub.s32 128, 64
      %25 = vsyncadd [#allocation3], %s24
      %s26 = sshll.u32 [#allocation2], 4
      %s27 = int_to_ptr.vmem [resolvable:$true] %s26
      %32 = dma.vmem_to_hbm [thread:$0]  %s27, 64, %s2, [#allocation3], 64, 64, 4
    $region13: #{tpu_custom_call.1} parent=1 // pred_fallthru
      _
    // Predicated region
    $region14: #{tpu_custom_call.1} parent=1 // pred_check
      _
    $region15: #{tpu_custom_call.1} parent=1 // pred_check_branch
      %34 = sbr.rel (0) target = $region17
    $region16: #{tpu_custom_call.1} parent=1 // pred_region
      %35 = dma.done [#allocation3], 128
    $region17: #{tpu_custom_call.1} parent=1 // pred_fallthru
      _
    %36 = vsyncpa [#allocation3], 1

</llo_original>
